<compile_context>
chip_gen: v6e
topology: v6e:2x2x1
jax: 0.10.0
libtpu: 0.0.40
codegen_flags: <defaults>
</compile_context>

<pallas_src>
import jax
import jax.numpy as jnp
from jax.experimental import pallas as pl
from jax.experimental.pallas import tpu as pltpu


def _self_attn_kernel_masked(h_ref, a_ref, b_ref, mask_ref, out_ref, att_ref):
    # h_ref:    (BB, S, D)
    # a_ref:    (D, Da)
    # b_ref:    (1, Da)      -- b stored as a lane-major row
    # mask_ref: (BB, S)      -- float32, 1.0 => padding token
    # out_ref:  (BB, D)
    # att_ref:  (BB, S)
    BB, S, D = h_ref.shape
    Da = a_ref.shape[1]

    h = h_ref[...]                                   # (BB, S, D)
    h2 = h.reshape(BB * S, D)                        # fold batch into MXU M dim

    # z = tanh(h @ a)  -> (BB*S, Da)   (single MXU pass for the whole block)
    z = jnp.tanh(jnp.dot(h2, a_ref[...], preferred_element_type=jnp.float32))

    # e = z @ b done as VPU multiply + lane reduce (avoids N=1 MXU pass)
    zb = (z * b_ref[...]).reshape(BB, S, Da)
    e = jnp.sum(zb, axis=-1)                         # (BB, S), S on lanes

    # mask handling (matches PyTorch semantics exactly):
    #   full_mask  = -1e30 * mask
    #   batch_mask = 1.0 if the row has at least one non-pad token else 0.0
    m = mask_ref[...]                                # (BB, S)
    full_mask = -1e30 * m
    batch_mask = (jnp.sum(1.0 - m, axis=-1, keepdims=True) > 0.5).astype(
        jnp.float32)                                 # (BB, 1)
    e = e + full_mask * batch_mask

    # lane-dense softmax over the sequence axis
    att = jax.nn.softmax(e, axis=-1)                 # (BB, S)

    # pooled[bb, d] = sum_s att[bb, s] * h[bb, s, d]  (VPU mul + sublane adds)
    pooled = jnp.sum(att[:, :, None] * h, axis=1)    # (BB, D)

    out_ref[...] = pooled.astype(out_ref.dtype)
    att_ref[...] = att.astype(att_ref.dtype)


def _self_attn_kernel_nomask(h_ref, a_ref, b_ref, out_ref, att_ref):
    BB, S, D = h_ref.shape
    Da = a_ref.shape[1]

    h = h_ref[...]                                   # (BB, S, D)
    h2 = h.reshape(BB * S, D)

    z = jnp.tanh(jnp.dot(h2, a_ref[...], preferred_element_type=jnp.float32))
    zb = (z * b_ref[...]).reshape(BB, S, Da)
    e = jnp.sum(zb, axis=-1)                         # (BB, S)

    att = jax.nn.softmax(e, axis=-1)                 # (BB, S)
    pooled = jnp.sum(att[:, :, None] * h, axis=1)    # (BB, D)

    out_ref[...] = pooled.astype(out_ref.dtype)
    att_ref[...] = att.astype(att_ref.dtype)


def _choose_block(B, S, D, itemsize):
    """Pick batch-block size BB and padded batch B_pad.

    Targets: BB*S >= 256 (fill MXU M dim on v6e/v7x), h block <= ~4 MiB per
    buffer so double-buffering stays well under every generation's scoped
    VMEM budget (incl. v5e's 16 MiB default and v7x's 64 MiB physical).
    """
    max_bb_by_bytes = max(1, (4 * 1024 * 1024) // max(1, S * D * itemsize))
    want_bb = max(1, -(-256 // S))                   # ceil(256 / S)
    bb = min(max_bb_by_bytes, max(want_bb, 8))
    if bb >= B:
        return B, B                                  # single grid step
    bb = max(8, (bb // 8) * 8)                       # sublane-aligned block
    b_pad = -(-B // bb) * bb
    return bb, b_pad


def self_attention_seq(h, a, b, mask=None, return_logits=False):
    """Pallas implementation of SelfAttentionSeq.forward.

    h:    (B, S, D) float32
    a:    (D, Da)   float32
    b:    (Da, 1)   float32
    mask: (B, S)    bool (True == padding) or None
    """
    B, S, D = h.shape
    Da = a.shape[1]

    a_f = a.astype(jnp.float32)
    b_row = b.reshape(1, Da).astype(jnp.float32)     # lane-major row of b

    BB, B_pad = _choose_block(B, S, D, jnp.dtype(h.dtype).itemsize)

    h_in = h
    if B_pad != B:
        h_in = jnp.pad(h, ((0, B_pad - B), (0, 0), (0, 0)))

    grid = (B_pad // BB,)
    out_shapes = (
        jax.ShapeDtypeStruct((B_pad, D), h.dtype),   # pooled
        jax.ShapeDtypeStruct((B_pad, S), h.dtype),   # attention
    )
    out_specs = [
        pl.BlockSpec((BB, D), lambda i: (i, 0)),
        pl.BlockSpec((BB, S), lambda i: (i, 0)),
    ]
    compiler_params = pltpu.CompilerParams(
        dimension_semantics=("parallel",),
        vmem_limit_bytes=32 * 1024 * 1024,
    )

    if mask is None:
        # dedicated mask-free kernel: no mask DMA, no mask math
        pooled, att = pl.pallas_call(
            _self_attn_kernel_nomask,
            out_shape=out_shapes,
            grid_spec=pltpu.PrefetchScalarGridSpec(
                num_scalar_prefetch=0,
                grid=grid,
                in_specs=[
                    pl.BlockSpec((BB, S, D), lambda i: (i, 0, 0)),   # h
                    pl.BlockSpec((D, Da), lambda i: (0, 0)),         # a
                    pl.BlockSpec((1, Da), lambda i: (0, 0)),         # b row
                ],
                out_specs=out_specs,
            ),
            compiler_params=compiler_params,
        )(h_in, a_f, b_row)
    else:
        mask_f = mask.astype(jnp.float32)
        if B_pad != B:
            mask_f = jnp.pad(mask_f, ((0, B_pad - B), (0, 0)))
        pooled, att = pl.pallas_call(
            _self_attn_kernel_masked,
            out_shape=out_shapes,
            grid_spec=pltpu.PrefetchScalarGridSpec(
                num_scalar_prefetch=0,
                grid=grid,
                in_specs=[
                    pl.BlockSpec((BB, S, D), lambda i: (i, 0, 0)),   # h
                    pl.BlockSpec((D, Da), lambda i: (0, 0)),         # a
                    pl.BlockSpec((1, Da), lambda i: (0, 0)),         # b row
                    pl.BlockSpec((BB, S), lambda i: (i, 0)),         # mask
                ],
                out_specs=out_specs,
            ),
            compiler_params=compiler_params,
        )(h_in, a_f, b_row, mask_f)

    pooled = pooled[:B]                              # drop batch padding
    att = att[:B]
    if return_logits:
        return pooled, att
    return pooled


def _xavier_uniform(key, shape, gain=1.414):
    fan_in, fan_out = shape[0], shape[1]
    bound = gain * jnp.sqrt(6.0 / (fan_in + fan_out))
    return jax.random.uniform(key, shape, jnp.float32, -bound, bound)


def _reference(h, a, b, mask):
    # pure-JAX reference of the PyTorch forward
    e = jnp.matmul(jnp.tanh(jnp.matmul(h, a)), b)            # (B, S, 1)
    if mask is not None:
        full_mask = -1e30 * mask.astype(jnp.float32)
        batch_mask = (jnp.sum((~mask).astype(jnp.int32), -1) > 0).astype(
            jnp.float32)[..., None]
        mm = full_mask * batch_mask
        e = e + mm[..., None]
    att = jax.nn.softmax(e, axis=1)
    pooled = jnp.matmul(jnp.swapaxes(att, 1, 2), h).squeeze(1)
    return pooled, att.squeeze(-1)


if __name__ == "__main__":
    B, S, D, Da = 2, 8, 32, 16

    key = jax.random.PRNGKey(0)
    k_h, k_a, k_b, k_m = jax.random.split(key, 4)

    h = jax.random.normal(k_h, (B, S, D), dtype=jnp.float32)
    a = _xavier_uniform(k_a, (D, Da))
    b = _xavier_uniform(k_b, (Da, 1))
    # deterministic mask: last 3 tokens of batch element 1 are padding
    mask = jnp.zeros((B, S), dtype=bool).at[1, S - 3:].set(True)

    # NOTE: dropout/alpha are stored but never used in the PyTorch forward,
    # so they are intentionally not implemented here.

    # masked path
    pooled, att = self_attention_seq(h, a, b, mask, return_logits=True)
    pooled = jax.block_until_ready(pooled)
    att = jax.block_until_ready(att)
    ref_pooled, ref_att = _reference(h, a, b, mask)
    assert jnp.allclose(pooled, ref_pooled, atol=1e-5, rtol=1e-5)
    assert jnp.allclose(att, ref_att, atol=1e-5, rtol=1e-5)

    # mask-free path (separate, lighter kernel)
    pooled_nm, att_nm = self_attention_seq(h, a, b, None, return_logits=True)
    pooled_nm = jax.block_until_ready(pooled_nm)
    att_nm = jax.block_until_ready(att_nm)
    ref_pooled_nm, ref_att_nm = _reference(h, a, b, None)
    assert jnp.allclose(pooled_nm, ref_pooled_nm, atol=1e-5, rtol=1e-5)
    assert jnp.allclose(att_nm, ref_att_nm, atol=1e-5, rtol=1e-5)

    print("KERNEL_OK")
</pallas_src>

<mosaic_0001>
module attributes {stable_mosaic.version = 11 : i64} {
  func.func @_self_attn_kernel_masked(%arg0: i32, %arg1: memref<2x8x32xf32, #tpu.memory_space<vmem>>, %arg2: memref<32x16xf32, #tpu.memory_space<vmem>>, %arg3: memref<1x16xf32, #tpu.memory_space<vmem>>, %arg4: memref<2x8xf32, #tpu.memory_space<vmem>>, %arg5: memref<2x32xf32, #tpu.memory_space<vmem>>, %arg6: memref<2x8xf32, #tpu.memory_space<vmem>>) attributes {dimension_semantics = [#tpu.dimension_semantics<parallel>], iteration_bounds = array<i64: 1>, scalar_prefetch = 0 : i64, scratch_operands = 0 : i64, tpu.core_type = #tpu.core_type<tc>, window_params = [{transform_indices = @transform_0, window_bounds = array<i64: 2, 8, 32>}, {pipeline_mode = #tpu.pipeline_mode<synchronous>, transform_indices = @transform_1, window_bounds = array<i64: 32, 16>}, {pipeline_mode = #tpu.pipeline_mode<synchronous>, transform_indices = @transform_2, window_bounds = array<i64: 1, 16>}, {transform_indices = @transform_3, window_bounds = array<i64: 2, 8>}, {transform_indices = @transform_4, window_bounds = array<i64: 2, 32>}, {transform_indices = @transform_5, window_bounds = array<i64: 2, 8>}]} {
    %c0 = arith.constant 0 : index
    %c0_0 = arith.constant 0 : index
    %c0_1 = arith.constant 0 : index
    %0 = vector.load %arg1[%c0, %c0_0, %c0_1] : memref<2x8x32xf32, #tpu.memory_space<vmem>>, vector<2x8x32xf32>
    %1 = vector.shape_cast %0 : vector<2x8x32xf32> to vector<16x32xf32>
    %c0_2 = arith.constant 0 : index
    %c0_3 = arith.constant 0 : index
    %2 = vector.load %arg2[%c0_2, %c0_3] : memref<32x16xf32, #tpu.memory_space<vmem>>, vector<32x16xf32>
    %cst = arith.constant dense<0.000000e+00> : vector<16x16xf32>
    %3 = tpu.matmul %1, %2, %cst {dimension_numbers = #tpu.dot_dimension_numbers<[1], [0], [0], [1], [0, 0, 1, 1], [], []>} : vector<16x32xf32>, vector<32x16xf32>, vector<16x16xf32> -> vector<16x16xf32>
    %4 = math.tanh %3 : vector<16x16xf32>
    %c0_4 = arith.constant 0 : index
    %c0_5 = arith.constant 0 : index
    %5 = vector.load %arg3[%c0_4, %c0_5] : memref<1x16xf32, #tpu.memory_space<vmem>>, vector<1x16xf32>
    %6 = vector.broadcast %5 : vector<1x16xf32> to vector<16x16xf32>
    %7 = arith.mulf %4, %6 : vector<16x16xf32>
    %8 = vector.shape_cast %7 : vector<16x16xf32> to vector<2x8x16xf32>
    %cst_6 = arith.constant dense<0.000000e+00> : vector<2x8xf32>
    %9 = vector.multi_reduction <add>, %8, %cst_6 [2] : vector<2x8x16xf32> to vector<2x8xf32>
    %c0_7 = arith.constant 0 : index
    %c0_8 = arith.constant 0 : index
    %10 = vector.load %arg4[%c0_7, %c0_8] : memref<2x8xf32, #tpu.memory_space<vmem>>, vector<2x8xf32>
    %cst_9 = arith.constant -1.000000e+30 : f32
    %11 = vector.broadcast %cst_9 : f32 to vector<2x8xf32>
    %12 = arith.mulf %11, %10 : vector<2x8xf32>
    %cst_10 = arith.constant 1.000000e+00 : f32
    %13 = vector.broadcast %cst_10 : f32 to vector<2x8xf32>
    %14 = arith.subf %13, %10 : vector<2x8xf32>
    %cst_11 = arith.constant dense<0.000000e+00> : vector<2xf32>
    %15 = vector.multi_reduction <add>, %14, %cst_11 [1] : vector<2x8xf32> to vector<2xf32>
    %16 = vector.shape_cast %15 : vector<2xf32> to vector<2x1xf32>
    %cst_12 = arith.constant 5.000000e-01 : f32
    %17 = vector.broadcast %cst_12 : f32 to vector<2x1xf32>
    %18 = arith.cmpf ogt, %16, %17 : vector<2x1xf32>
    %19 = arith.extui %18 : vector<2x1xi1> to vector<2x1xi32>
    %20 = arith.sitofp %19 : vector<2x1xi32> to vector<2x1xf32>
    %21 = vector.broadcast %20 : vector<2x1xf32> to vector<2x8xf32>
    %22 = arith.mulf %12, %21 : vector<2x8xf32>
    %23 = arith.addf %9, %22 : vector<2x8xf32>
    %cst_13 = arith.constant dense<0xFF800000> : vector<2xf32>
    %24 = vector.multi_reduction <maximumf>, %23, %cst_13 [1] : vector<2x8xf32> to vector<2xf32>
    %cst_14 = arith.constant 0xFF800000 : f32
    %25 = vector.broadcast %cst_14 : f32 to vector<2xf32>
    %26 = arith.maximumf %25, %24 : vector<2xf32>
    %27 = vector.shape_cast %26 : vector<2xf32> to vector<2x1xf32>
    %28 = vector.broadcast %27 : vector<2x1xf32> to vector<2x8xf32>
    %29 = arith.subf %23, %28 : vector<2x8xf32>
    %30 = math.exp %29 : vector<2x8xf32>
    %cst_15 = arith.constant dense<0.000000e+00> : vector<2xf32>
    %31 = vector.multi_reduction <add>, %30, %cst_15 [1] : vector<2x8xf32> to vector<2xf32>
    %32 = vector.shape_cast %31 : vector<2xf32> to vector<2x1xf32>
    %33 = vector.broadcast %32 : vector<2x1xf32> to vector<2x8xf32>
    %34 = arith.divf %30, %33 : vector<2x8xf32>
    %35 = vector.shape_cast %34 : vector<2x8xf32> to vector<2x8x1xf32>
    %36 = vector.broadcast %35 : vector<2x8x1xf32> to vector<2x8x32xf32>
    %37 = arith.mulf %36, %0 : vector<2x8x32xf32>
    %cst_16 = arith.constant dense<0.000000e+00> : vector<2x32xf32>
    %38 = vector.multi_reduction <add>, %37, %cst_16 [1] : vector<2x8x32xf32> to vector<2x32xf32>
    %c0_17 = arith.constant 0 : index
    %c0_18 = arith.constant 0 : index
    %39 = vector.load %arg5[%c0_17, %c0_18] : memref<2x32xf32, #tpu.memory_space<vmem>>, vector<2x32xf32>
    tpu.vector_store %arg5[%c0_17, %c0_18], %38 {strides = array<i32>} : memref<2x32xf32, #tpu.memory_space<vmem>>, vector<2x32xf32>,
    %c0_19 = arith.constant 0 : index
    %c0_20 = arith.constant 0 : index
    %40 = vector.load %arg6[%c0_19, %c0_20] : memref<2x8xf32, #tpu.memory_space<vmem>>, vector<2x8xf32>
    tpu.vector_store %arg6[%c0_19, %c0_20], %34 {strides = array<i32>} : memref<2x8xf32, #tpu.memory_space<vmem>>, vector<2x8xf32>,
    return
  }
  func.func @transform_0(%arg0: i32) -> (i32, i32, i32) {
    %c0_i32 = arith.constant 0 : i32
    %c0_i32_0 = arith.constant 0 : i32
    %c0_i32_1 = arith.constant 0 : i32
    return %arg0, %c0_i32, %c0_i32_0 : i32, i32, i32
  }
  func.func @transform_1(%arg0: i32) -> (i32, i32) {
    %c0_i32 = arith.constant 0 : i32
    %c0_i32_0 = arith.constant 0 : i32
    %c0_i32_1 = arith.constant 0 : i32
    return %c0_i32, %c0_i32_0 : i32, i32
  }
  func.func @transform_2(%arg0: i32) -> (i32, i32) {
    %c0_i32 = arith.constant 0 : i32
    %c0_i32_0 = arith.constant 0 : i32
    %c0_i32_1 = arith.constant 0 : i32
    return %c0_i32, %c0_i32_0 : i32, i32
  }
  func.func @transform_3(%arg0: i32) -> (i32, i32) {
    %c0_i32 = arith.constant 0 : i32
    %c0_i32_0 = arith.constant 0 : i32
    return %arg0, %c0_i32 : i32, i32
  }
  func.func @transform_4(%arg0: i32) -> (i32, i32) {
    %c0_i32 = arith.constant 0 : i32
    %c0_i32_0 = arith.constant 0 : i32
    return %arg0, %c0_i32 : i32, i32
  }
  func.func @transform_5(%arg0: i32) -> (i32, i32) {
    %c0_i32 = arith.constant 0 : i32
    %c0_i32_0 = arith.constant 0 : i32
    return %arg0, %c0_i32 : i32, i32
  }
}

</mosaic_0001>

<llo_original>
// kernel: tpu_custom_call.1
$region0: #{tpu_custom_call.1}
  #allocation0 [shape = 'u32[]', space=smem, size = 0x4, offset = 0x4, fixed_abs, tag = 'smem constant byte address 0x4 - core index']
  #allocation1 [shape = 'u32[144,128]{1,0:T(1,128)}', space=vmem, size = 0x12000, scoped, tag = 'internal scratch']
  %s0 = inlined_call_operand.vmem [shape: f32[2,8,32], index: 0, kind: input, shape index: {}]
  %s1 = inlined_call_operand.vmem [shape: f32[32,16], index: 1, kind: input, shape index: {}]
  %s2 = inlined_call_operand.vmem [shape: f32[1,16], index: 2, kind: input, shape index: {}]
  %s3 = inlined_call_operand.vmem [shape: f32[2,8], index: 3, kind: input, shape index: {}]
  %s4 = inlined_call_operand.hbm [shape: f32[2,32], index: 4, kind: output, shape index: {0}]
  %s5 = inlined_call_operand.hbm [shape: f32[2,8], index: 5, kind: output, shape index: {1}]
  %6 = xla_tuple %s4, %s5
  %s7 = sld [smem:[#allocation0]]
  $region34: #{tpu_custom_call.1} parent=0
    _
  %s9 = ssub.s32 1, %s7
  %s10 = scalar_select 0, %s9, %s7
  $region1: #{tpu_custom_call.1} parent=0
    #allocation2 [shape = 'u8[1024]{0}', space=vmem, size = 0x400, scoped, tag = 'output window, operand 0, single buffered']
    #allocation3 [shape = 's32[1]{0}', space=sflag, size = 0x4, scoped, tag = 'scoped memory for tpu_custom_call.1']
    #allocation4 [shape = 'u8[1024]{0}', space=vmem, size = 0x400, scoped, tag = 'output window, operand 1, single buffered']
    #allocation5 [shape = 's32[1]{0}', space=sflag, size = 0x4, scoped, tag = 'scoped memory for tpu_custom_call.1']
    %11 = vsyncpa [#allocation3], 0
    %12 = vsyncpa [#allocation5], 0
    // Predicated region
    $region2: #{tpu_custom_call.1} parent=1 // pred_check
      _
    $region3: #{tpu_custom_call.1} parent=1 // pred_check_branch
      %14 = sbr.rel (0) target = $region5
    $region4: #{tpu_custom_call.1} parent=1 // pred_region
      _
    $region5: #{tpu_custom_call.1} parent=1 // pred_fallthru
      _
    // Predicated region
    $region6: #{tpu_custom_call.1} parent=1 // pred_check
      _
    $region7: #{tpu_custom_call.1} parent=1 // pred_check_branch
      %16 = sbr.rel (0) target = $region9
    $region8: #{tpu_custom_call.1} parent=1 // pred_region
      _
    $region9: #{tpu_custom_call.1} parent=1 // pred_fallthru
      _
    // Predicated region
    $region10: #{tpu_custom_call.1} parent=1 // pred_check
      _
    $region11: #{tpu_custom_call.1} parent=1 // pred_check_branch
      %18 = sbr.rel (0) target = $region13
    $region12: #{tpu_custom_call.1} parent=1 // pred_region
      _
    $region13: #{tpu_custom_call.1} parent=1 // pred_fallthru
      _
    // Predicated region
    $region14: #{tpu_custom_call.1} parent=1 // pred_check
      _
    $region15: #{tpu_custom_call.1} parent=1 // pred_check_branch
      %20 = sbr.rel (0) target = $region17
    $region16: #{tpu_custom_call.1} parent=1 // pred_region
      _
    $region17: #{tpu_custom_call.1} parent=1 // pred_fallthru
      _
    %v21 = vld [vmem:[%s0] sm:$0xff]
    %v22 = vld [vmem:[%s0 + $0x8] sm:$0xff]
    %v23 = vld [vmem:[%s1] sm:$0xff]
    %v24 = vld [vmem:[%s1 + $0x8] sm:$0xff]
    %v25 = vld [vmem:[%s1 + $0x10] sm:$0xff]
    %v26 = vld [vmem:[%s1 + $0x18] sm:$0xff]
    %vm27 = vcmask 261120
    %v29 = vsel %vm27, %v21, 0
    %v32 = vsel %vm27, %v22, 0
    %34 = vmatprep.subr.mxu0 0.0
    %35 = vmatpush1.msra.mxu0 0.0
    %36 = vmatprep.subr.mxu0 0.0
    %37 = vmatpush1.msra.mxu0 0.0
    %38 = vmatprep.subr.mxu0 0.0
    %39 = vmatpush1.msra.mxu0 0.0
    %40 = vmatprep.subr.mxu0 0.0
    %41 = vmatpush1.msra.mxu0 0.0
    %42 = vmatprep.subr.mxu0 0.0
    %43 = vmatpush1.msra.mxu0 0.0
    %44 = vmatprep.subr.mxu0 0.0
    %45 = vmatpush1.msra.mxu0 0.0
    %46 = vmatprep.subr.mxu0 0.0
    %47 = vmatpush1.msra.mxu0 0.0
    %48 = vmatprep.subr.mxu0 0.0
    %49 = vmatpush1.msra.mxu0 0.0
    %50 = vmatprep.subr.mxu0 0.0
    %51 = vmatpush1.msra.mxu0 0.0
    %52 = vmatprep.subr.mxu0 0.0
    %53 = vmatpush1.msra.mxu0 0.0
    %54 = vmatprep.subr.mxu0 0.0
    %55 = vmatpush1.msra.mxu0 0.0
    %56 = vmatprep.subr.mxu0 0.0
    %57 = vmatpush1.msra.mxu0 0.0
    %58 = vmatprep.subr.mxu0 0.0
    %59 = vmatpush1.msra.mxu0 %v26
    %60 = vmatprep.subr.mxu0 0.0
    %61 = vmatpush1.msra.mxu0 %v25
    %62 = vmatprep.subr.mxu0 0.0
    %63 = vmatpush1.msra.mxu0 %v24
    %64 = vmatprep.subr.mxu0 0.0
    %65 = vmatpush1.msra.mxu0 %v23
    %66 = vmatprep.subr.mxu0 0.0
    %67 = vmatpush2.msra.mxu0 0.0
    %68 = vmatprep.subr.mxu0 0.0
    %69 = vmatpush2.msra.mxu0 0.0
    %70 = vmatprep.subr.mxu0 0.0
    %71 = vmatpush2.msra.mxu0 0.0
    %72 = vmatprep.subr.mxu0 0.0
    %73 = vmatpush2.msra.mxu0 0.0
    %74 = vmatprep.subr.mxu0 0.0
    %75 = vmatpush2.msra.mxu0 0.0
    %76 = vmatprep.subr.mxu0 0.0
    %77 = vmatpush2.msra.mxu0 0.0
    %78 = vmatprep.subr.mxu0 0.0
    %79 = vmatpush2.msra.mxu0 0.0
    %80 = vmatprep.subr.mxu0 0.0
    %81 = vmatpush2.msra.mxu0 0.0
    %82 = vmatprep.subr.mxu0 0.0
    %83 = vmatpush2.msra.mxu0 0.0
    %84 = vmatprep.subr.mxu0 0.0
    %85 = vmatpush2.msra.mxu0 0.0
    %86 = vmatprep.subr.mxu0 0.0
    %87 = vmatpush2.msra.mxu0 0.0
    %88 = vmatprep.subr.mxu0 0.0
    %89 = vmatpush2.msra.mxu0 0.0
    %90 = vmatprep.subr.mxu0 0.0
    %91 = vmatpush2.msra.mxu0 0.0
    %92 = vmatprep.subr.mxu0 0.0
    %93 = vmatpush2.msra.mxu0 0.0
    %94 = vmatprep.subr.mxu0 0.0
    %95 = vmatpush2.msra.mxu0 0.0
    %96 = vmatprep.subr.mxu0 0.0
    %97 = vmatpush2.msra.mxu0 0.0
    %98 = vmatprep.mubr.f32.mxu0 0.0
    %99 = vmatmul.mubr.f32.gmra.mxu0 %v29
    %v100 = vpop.f32.mrf.mxu0
    %v101 = vadd.f32 0.0, %v100
    %v102 = vpop.f32.mrf.mxu0
    %103 = vmatprep.mubr.f32.mxu0 0.0
    %104 = vmatmul.mubr.f32.gmra.mxu0 %v32
    %v105 = vpop.f32.mrf.mxu0
    %v106 = vadd.f32 0.0, %v105
    %v107 = vpop.f32.mrf.mxu0
    %108 = vdwg.mxu0
    %v109 = vtanh.pop %v101
    %v110 = vtanh.pop %v106
    %v111 = vld [vmem:[%s2] sm:$0x1]
    %v113 = vlaneseq
    %v114 = vshrl.u32 %v113, 7
    %v115 = vsub.s32 0, %v114
    %v116 = vrot.slane %v111, %v115
    %v118 = vmul.f32 %v109, %v116
    %v119 = vmul.f32 %v110, %v116
    %vm120 = vcmask 130048
    %v121 = vsel %vm120, %v118, 0.0
    %122 = vadd.xlane.f32.xlu0 %v121
    %v123 = vpop.xlane.xlu0 %122
    %v124 = vsel %vm120, %v119, 0.0
    %125 = vadd.xlane.f32.xlu0 %v124
    %v126 = vpop.xlane.xlu0 %125
    %v127 = vld [vmem:[%s3] sm:$0x3]
    %v128 = vmul.f32 %v127, -1e+30
    %v129 = vsub.f32 1.0, %v127
    %vm130 = vcmask 58368
    %v131 = vsel %vm130, %v129, 0.0
    %132 = vadd.xlane.f32.xlu0 %v131
    %v133 = vpop.xlane.xlu0 %132
    %vm134 = vcmp.gt.f32.partialorder %v133, 0.5
    %v135 = vsel %vm134, 1, 0
    %v136 = vcvt.s32.f32 %v135
    %v137 = vmul.f32 %v128, %v136
    %v139 = vlaneseq
    %v140 = vshrl.u32 %v139, 7
    %v141 = vsub.s32 0, %v140
    %v142 = vrot.slane %v137, %v141
    %144 = vbcast.lane.b32.xlu0 %v142, 256
    %v145 = vpop.permute.xlu0 %144
    %v146 = vlaneseq
    %v147 = vshrl.u32 %v146, 7
    %v148 = vsub.s32 1, %v147
    %v149 = vrot.slane %v137, %v148
    %151 = vbcast.lane.b32.xlu0 %v149, 256
    %v152 = vpop.permute.xlu0 %151
    %v155 = vadd.f32 %v123, %v145
    %v156 = vadd.f32 %v126, %v152
    %159 = vset.pattern.permute.xlu0 0
    %160 = vperm.xlu0 %159, %v155
    %v161 = vpop.permute.xlu0 %160
    %162 = vset.pattern.permute.xlu0 0
    %163 = vperm.xlu0 %162, %v156
    %v164 = vpop.permute.xlu0 %163
    %v165 = vlaneseq
    %v166 = vand.u32 %v165, 127
    %v167 = vlaneseq
    %v168 = vshrl.u32 %v167, 7
    %v169 = vsub.s32 %v166, %v168
    %v170 = vrot.slane %v161, %v169
    %v171 = vlaneseq
    %v172 = vshrl.u32 %v171, 7
    %v173 = vsub.s32 %v166, %v172
    %v174 = vrot.slane %v164, %v173
    %vm175 = vcmask 1041409
    %v176 = vsel %vm175, %v174, %v170
    %v178 = vsel %vm130, %v176, -inf
    %179 = vmax.xlane.f32.xlu0 %v178
    %v180 = vpop.xlane.xlu0 %179
    %v182 = vlaneseq
    %v183 = vshrl.u32 %v182, 7
    %v184 = vsub.s32 0, %v183
    %v185 = vrot.slane %v180, %v184
    %v186 = vlaneseq
    %v187 = vshrl.u32 %v186, 7
    %v188 = vsub.s32 1, %v187
    %v189 = vrot.slane %v180, %v188
    %v192 = vsub.f32 %v155, %v185
    %v193 = vsub.f32 %v156, %v189
    %v194 = vmul.f32 %v192, 1.442695
    %v195 = vpow.pop %v194
    %v196 = vmul.f32 %v193, 1.442695
    %v197 = vpow.pop %v196
    %200 = vset.pattern.permute.xlu0 0
    %201 = vperm.xlu0 %200, %v195
    %v202 = vpop.permute.xlu0 %201
    %203 = vset.pattern.permute.xlu0 0
    %204 = vperm.xlu0 %203, %v197
    %v205 = vpop.permute.xlu0 %204
    %v206 = vlaneseq
    %v207 = vshrl.u32 %v206, 7
    %v208 = vsub.s32 %v166, %v207
    %v209 = vrot.slane %v202, %v208
    %v210 = vlaneseq
    %v211 = vshrl.u32 %v210, 7
    %v212 = vsub.s32 %v166, %v211
    %v213 = vrot.slane %v205, %v212
    %v214 = vsel %vm175, %v213, %v209
    %v216 = vsel %vm130, %v214, 0.0
    %217 = vadd.xlane.f32.xlu0 %v216
    %v218 = vpop.xlane.xlu0 %217
    %v220 = vlaneseq
    %v221 = vshrl.u32 %v220, 7
    %v222 = vsub.s32 0, %v221
    %v223 = vrot.slane %v218, %v222
    %v224 = vlaneseq
    %v225 = vshrl.u32 %v224, 7
    %v226 = vsub.s32 1, %v225
    %v227 = vrot.slane %v218, %v226
    %v230 = vrcp.pop %v223
    %v231 = vmul.f32 %v195, %v230
    %v232 = vrcp.pop %v227
    %v233 = vmul.f32 %v197, %v232
    %235 = vset.pattern.permute.xlu0 0
    %236 = vperm.xlu0 %235, %v231
    %v237 = vpop.permute.xlu0 %236
    %240 = vset.pattern.permute.xlu0 0
    %241 = vperm.xlu0 %240, %v233
    %v242 = vpop.permute.xlu0 %241
    %v244 = vmul.f32 %v237, %v21
    %v245 = vmul.f32 %v242, %v22
    %v246 = vsel %vm27, %v244, 0.0
    %v247 = vrot.slane %v246, 4
    %v248 = vadd.f32 %v246, %v247
    %v249 = vrot.slane %v248, 2
    %v250 = vadd.f32 %v248, %v249
    %v251 = vrot.slane %v250, 1
    %v252 = vadd.f32 %v250, %v251
    %v253 = vsel %vm27, %v245, 0.0
    %v254 = vrot.slane %v253, 4
    %v255 = vadd.f32 %v253, %v254
    %v256 = vrot.slane %v255, 2
    %v257 = vadd.f32 %v255, %v256
    %v258 = vrot.slane %v257, 1
    %v259 = vadd.f32 %v257, %v258
    %v262 = vsel %vm175, %v259, %v252
    %vm264 = vcmask 254976
    %265 = vst.msk [vmem:[#allocation2] sm:$0x3] %vm264, %v262
    %v266 = vlaneseq
    %v267 = vshrl.u32 %v266, 7
    %v268 = vsub.s32 %v166, %v267
    %v269 = vrot.slane %v237, %v268
    %v270 = vlaneseq
    %v271 = vshrl.u32 %v270, 7
    %v272 = vsub.s32 %v166, %v271
    %v273 = vrot.slane %v242, %v272
    %v274 = vsel %vm175, %v273, %v269
    %276 = vst.msk [vmem:[#allocation4] sm:$0x3] %vm130, %v274
    // Predicated region
    $region18: #{tpu_custom_call.1} parent=1 // pred_check
      _
    $region19: #{tpu_custom_call.1} parent=1 // pred_check_branch
      %278 = sbr.rel (0) target = $region21
    $region20: #{tpu_custom_call.1} parent=1 // pred_region
      %s280 = ssub.s32 32, 32
      %281 = vsyncadd [#allocation3], %s280
      %s283 = sshll.u32 [#allocation2], 4
      %s284 = int_to_ptr.vmem [resolvable:$true] %s283
      %286 = dma.vmem_to_hbm [thread:$0]  %s284, 32, %s4, [#allocation3]
    $region21: #{tpu_custom_call.1} parent=1 // pred_fallthru
      _
    // Predicated region
    $region22: #{tpu_custom_call.1} parent=1 // pred_check
      _
    $region23: #{tpu_custom_call.1} parent=1 // pred_check_branch
      %288 = sbr.rel (0) target = $region25
    $region24: #{tpu_custom_call.1} parent=1 // pred_region
      %s290 = ssub.s32 32, 32
      %291 = vsyncadd [#allocation5], %s290
      %s293 = sshll.u32 [#allocation4], 4
      %s294 = int_to_ptr.vmem [resolvable:$true] %s293
      %296 = dma.vmem_to_hbm [thread:$0]  %s294, 32, %s5, [#allocation5]
    $region25: #{tpu_custom_call.1} parent=1 // pred_fallthru
      _
    // Predicated region
    $region26: #{tpu_custom_call.1} parent=1 // pred_check
      _
    $region27: #{tpu_custom_call.1} parent=1 // pred_check_branch
      %298 = sbr.rel (0) target = $region29
    $region28: #{tpu_custom_call.1} parent=1 // pred_region
      %299 = dma.done [#allocation3], 32
    $region29: #{tpu_custom_call.1} parent=1 // pred_fallthru
      _
    // Predicated region
    $region30: #{tpu_custom_call.1} parent=1 // pred_check
      _
    $region31: #{tpu_custom_call.1} parent=1 // pred_check_branch
      %301 = sbr.rel (0) target = $region33
    $region32: #{tpu_custom_call.1} parent=1 // pred_region
      %302 = dma.done [#allocation5], 32
    $region33: #{tpu_custom_call.1} parent=1 // pred_fallthru
      _
    %303 = vsyncpa [#allocation3], 1
    %304 = vsyncpa [#allocation5], 1

</llo_original>
